<compile_context>
chip_gen: v7x
topology: tpu7x:2x2x1
jax: 0.10.0
libtpu: 0.0.40
codegen_flags: <defaults>
</compile_context>

<pallas_src>
import functools

import jax
import jax.numpy as jnp
from jax import lax
from jax.experimental import pallas as pl
from jax.experimental.pallas import tpu as pltpu

# TODO(synk): inv_loss='cca' (SVD-based CCALoss) and 'ntxent' variants of the
# module are not implemented; only the default inv_loss='mse' path is.


def _pick_block(dim, candidates):
    for c in candidates:
        if c <= dim and dim % c == 0:
            return c
    return dim


# ---------------------------------------------------------------------------
# Pass 1: per-feature column sums + per-feature sum of squared differences.
# ---------------------------------------------------------------------------
def _stats_kernel(za_ref, zb_ref, sa_ref, sb_ref, sd_ref):
    @pl.when(pl.program_id(1) == 0)
    def _init():
        sa_ref[...] = jnp.zeros_like(sa_ref)
        sb_ref[...] = jnp.zeros_like(sb_ref)
        sd_ref[...] = jnp.zeros_like(sd_ref)

    za = za_ref[...].astype(jnp.float32)
    zb = zb_ref[...].astype(jnp.float32)
    diff = za - zb
    sa_ref[...] += jnp.sum(za, axis=0, keepdims=True)
    sb_ref[...] += jnp.sum(zb, axis=0, keepdims=True)
    sd_ref[...] += jnp.sum(diff * diff, axis=0, keepdims=True)


# ---------------------------------------------------------------------------
# Pass 2: tiled covariance / variance accumulation.
# ---------------------------------------------------------------------------
def _cov_kernel(za_i_ref, za_j_ref, zb_i_ref, zb_j_ref,
                ma_i_ref, ma_j_ref, mb_i_ref, mb_j_ref,
                offd_a_ref, offd_b_ref, hinge_a_ref, hinge_b_ref,
                gram_a_ref, gram_b_ref, va_ref, vb_ref,
                *, n_rows, var_eps):
    i = pl.program_id(0)
    j = pl.program_id(1)
    k = pl.program_id(2)

    @pl.when(k == 0)
    def _init():
        gram_a_ref[...] = jnp.zeros_like(gram_a_ref)
        gram_b_ref[...] = jnp.zeros_like(gram_b_ref)
        va_ref[...] = jnp.zeros_like(va_ref)
        vb_ref[...] = jnp.zeros_like(vb_ref)

    # Centered tiles (two-pass: means from the stats kernel).
    ca_i = za_i_ref[...].astype(jnp.float32) - ma_i_ref[...]
    ca_j = za_j_ref[...].astype(jnp.float32) - ma_j_ref[...]
    cb_i = zb_i_ref[...].astype(jnp.float32) - mb_i_ref[...]
    cb_j = zb_j_ref[...].astype(jnp.float32) - mb_j_ref[...]

    # z_i^T @ z_j without materializing the transpose: contract over axis 0.
    dn = (((0,), (0,)), ((), ()))
    gram_a_ref[...] += lax.dot_general(ca_i, ca_j, dn,
                                       preferred_element_type=jnp.float32)
    gram_b_ref[...] += lax.dot_general(cb_i, cb_j, dn,
                                       preferred_element_type=jnp.float32)

    # Per-feature centered second moment, only needed on diagonal tiles.
    @pl.when(i == j)
    def _diag_acc():
        va_ref[...] += jnp.sum(ca_i * ca_i, axis=0, keepdims=True)
        vb_ref[...] += jnp.sum(cb_i * cb_i, axis=0, keepdims=True)

    @pl.when(k == pl.num_programs(2) - 1)
    def _finalize():
        inv_nm1 = 1.0 / (n_rows - 1)
        cov_a = gram_a_ref[...] * inv_nm1
        cov_b = gram_b_ref[...] * inv_nm1
        sum_a2 = jnp.sum(cov_a * cov_a)
        sum_b2 = jnp.sum(cov_b * cov_b)

        # diag(cov) == per-feature variance (same (N-1) normalization):
        # trace subtraction replaces the off-diagonal iota/where masking.
        var_a = va_ref[...] * inv_nm1      # (1, td); zeros on off-diag tiles
        var_b = vb_ref[...] * inv_nm1
        diag_a2 = jnp.sum(var_a * var_a)
        diag_b2 = jnp.sum(var_b * var_b)

        std_a = jnp.sqrt(var_a + var_eps)
        std_b = jnp.sqrt(var_b + var_eps)
        h_a = jnp.sum(jnp.maximum(1.0 - std_a, 0.0))
        h_b = jnp.sum(jnp.maximum(1.0 - std_b, 0.0))

        on_diag = i == j
        offd_a_ref[0, 0, 0, 0] = sum_a2 - jnp.where(on_diag, diag_a2, 0.0)
        offd_b_ref[0, 0, 0, 0] = sum_b2 - jnp.where(on_diag, diag_b2, 0.0)
        hinge_a_ref[0, 0, 0, 0] = jnp.where(on_diag, h_a, 0.0)
        hinge_b_ref[0, 0, 0, 0] = jnp.where(on_diag, h_b, 0.0)


# ---------------------------------------------------------------------------
# Wrapper
# ---------------------------------------------------------------------------
def vicreg_loss(z_a, z_b, vic_weights=(25.0, 25.0, 1.0), each_comp=False,
                var_eps=1e-8):
    """VICReg loss (MSE invariance). vic_weights = (var_w, inv_w, cov_w)."""
    var_w, inv_w, cov_w = (float(w) for w in vic_weights)
    N, D = z_a.shape
    assert z_b.shape == (N, D)
    assert N >= 2, "VICReg variance/covariance require at least 2 samples"

    block_d = _pick_block(D, (256, 128))
    block_n = _pick_block(N, (512, 256, 128, 64, 32, 16, 8))
    n_di = D // block_d
    n_nk = N // block_n

    vmem_limit = 32 * 1024 * 1024  # fits every generation incl. v7x (64 MiB)

    # ---- pass 1: column sums + per-feature sum of squared differences ----
    sum_a, sum_b, sqdiff = pl.pallas_call(
        _stats_kernel,
        out_shape=(
            jax.ShapeDtypeStruct((1, D), jnp.float32),
            jax.ShapeDtypeStruct((1, D), jnp.float32),
            jax.ShapeDtypeStruct((1, D), jnp.float32),
        ),
        grid=(n_di, n_nk),
        in_specs=[
            pl.BlockSpec((block_n, block_d), lambda d, n: (n, d)),
            pl.BlockSpec((block_n, block_d), lambda d, n: (n, d)),
        ],
        out_specs=(
            pl.BlockSpec((1, block_d), lambda d, n: (0, d)),
            pl.BlockSpec((1, block_d), lambda d, n: (0, d)),
            pl.BlockSpec((1, block_d), lambda d, n: (0, d)),
        ),
        compiler_params=pltpu.CompilerParams(
            dimension_semantics=("parallel", "arbitrary"),
            vmem_limit_bytes=vmem_limit,
        ),
    )(z_a, z_b)

    mean_a = sum_a / N
    mean_b = sum_b / N

    # ---- pass 2: tiled covariance / variance ----
    cov_kernel = functools.partial(_cov_kernel, n_rows=N, var_eps=var_eps)
    tile_out = jax.ShapeDtypeStruct((n_di, n_di, 1, 1), jnp.float32)
    data_spec_i = pl.BlockSpec((block_n, block_d), lambda i, j, k: (k, i))
    data_spec_j = pl.BlockSpec((block_n, block_d), lambda i, j, k: (k, j))
    mean_spec_i = pl.BlockSpec((1, block_d), lambda i, j, k: (0, i))
    mean_spec_j = pl.BlockSpec((1, block_d), lambda i, j, k: (0, j))
    out_spec = pl.BlockSpec((1, 1, 1, 1), lambda i, j, k: (i, j, 0, 0))

    offd_a, offd_b, hinge_a, hinge_b = pl.pallas_call(
        cov_kernel,
        out_shape=(tile_out, tile_out, tile_out, tile_out),
        grid=(n_di, n_di, n_nk),
        in_specs=[data_spec_i, data_spec_j, data_spec_i, data_spec_j,
                  mean_spec_i, mean_spec_j, mean_spec_i, mean_spec_j],
        out_specs=(out_spec, out_spec, out_spec, out_spec),
        scratch_shapes=[
            pltpu.VMEM((block_d, block_d), jnp.float32),
            pltpu.VMEM((block_d, block_d), jnp.float32),
            pltpu.VMEM((1, block_d), jnp.float32),
            pltpu.VMEM((1, block_d), jnp.float32),
        ],
        compiler_params=pltpu.CompilerParams(
            dimension_semantics=("parallel", "parallel", "arbitrary"),
            vmem_limit_bytes=vmem_limit,
        ),
    )(z_a, z_a, z_b, z_b, mean_a, mean_a, mean_b, mean_b)

    # ---- tiny final combine (O(D + tiles) elements) ----
    loss_inv = jnp.sum(sqdiff) / (N * D)
    loss_var = (jnp.sum(hinge_a) + jnp.sum(hinge_b)) / D
    loss_cov = (jnp.sum(offd_a) + jnp.sum(offd_b)) / D
    loss = inv_w * loss_inv + var_w * loss_var + cov_w * loss_cov
    if each_comp:
        return loss, loss_var, loss_inv, loss_cov
    return loss


def _vicreg_ref(z_a, z_b, vic_weights=(25.0, 25.0, 1.0)):
    """Pure-JAX reference mirroring the PyTorch module (inv_loss='mse')."""
    var_w, inv_w, cov_w = vic_weights
    eps = 1e-8
    N, D = z_a.shape
    loss_inv = jnp.mean((z_a - z_b) ** 2)
    std_a = jnp.sqrt(jnp.var(z_a, axis=0, ddof=1) + eps)
    std_b = jnp.sqrt(jnp.var(z_b, axis=0, ddof=1) + eps)
    loss_var = jnp.mean(jax.nn.relu(1 - std_a)) + jnp.mean(jax.nn.relu(1 - std_b))
    ca = z_a - z_a.mean(axis=0)
    cb = z_b - z_b.mean(axis=0)
    cov_a = (ca.T @ ca / (N - 1)) ** 2
    cov_b = (cb.T @ cb / (N - 1)) ** 2
    loss_cov = ((cov_a.sum() - jnp.trace(cov_a)) / D
                + (cov_b.sum() - jnp.trace(cov_b)) / D)
    return inv_w * loss_inv + var_w * loss_var + cov_w * loss_cov


if __name__ == "__main__":
    key = jax.random.PRNGKey(0)
    k1, k2 = jax.random.split(key)
    # Small shapes, but chosen to exercise multi-tile grids:
    # N=24 -> 3 N-blocks of 8; D=384 -> 3 D-blocks of 128 (3x3x3 cov grid).
    N, D = 24, 384
    z_a = jax.random.normal(k1, (N, D), dtype=jnp.float32)
    z_b = 0.5 * z_a + 0.5 * jax.random.normal(k2, (N, D), dtype=jnp.float32)

    loss = vicreg_loss(z_a, z_b)
    loss = jax.block_until_ready(loss)

    ref = _vicreg_ref(z_a, z_b)
    assert jnp.allclose(loss, ref, rtol=1e-4, atol=1e-4), (loss, ref)
    print("KERNEL_OK")
</pallas_src>

<mosaic_0001>
module attributes {stable_mosaic.version = 11 : i64} {
  func.func @_stats_kernel(%arg0: i32, %arg1: i32, %arg2: memref<8x128xf32, #tpu.memory_space<vmem>>, %arg3: memref<8x128xf32, #tpu.memory_space<vmem>>, %arg4: memref<1x128xf32, #tpu.memory_space<vmem>>, %arg5: memref<1x128xf32, #tpu.memory_space<vmem>>, %arg6: memref<1x128xf32, #tpu.memory_space<vmem>>) attributes {dimension_semantics = [#tpu.dimension_semantics<parallel>, #tpu.dimension_semantics<arbitrary>], iteration_bounds = array<i64: 3, 3>, scalar_prefetch = 0 : i64, scratch_operands = 0 : i64, tpu.core_type = #tpu.core_type<tc>, window_params = [{transform_indices = @transform_0, window_bounds = array<i64: 8, 128>}, {transform_indices = @transform_1, window_bounds = array<i64: 8, 128>}, {transform_indices = @transform_2, window_bounds = array<i64: 1, 128>}, {transform_indices = @transform_3, window_bounds = array<i64: 1, 128>}, {transform_indices = @transform_4, window_bounds = array<i64: 1, 128>}]} {
    %c0_i32 = arith.constant 0 : i32
    %0 = arith.cmpi eq, %arg1, %c0_i32 : i32
    %1 = arith.extui %0 : i1 to i32
    %c0_i32_0 = arith.constant 0 : i32
    %2 = arith.cmpi ne, %1, %c0_i32_0 : i32
    scf.if %2 {
      %cst_18 = arith.constant 0.000000e+00 : f32
      %22 = vector.broadcast %cst_18 : f32 to vector<1x128xf32>
      %c0_19 = arith.constant 0 : index
      %c0_20 = arith.constant 0 : index
      %23 = vector.load %arg4[%c0_19, %c0_20] : memref<1x128xf32, #tpu.memory_space<vmem>>, vector<1x128xf32>
      tpu.vector_store %arg4[%c0_19, %c0_20], %22 {strides = array<i32>} : memref<1x128xf32, #tpu.memory_space<vmem>>, vector<1x128xf32>,
      %cst_21 = arith.constant 0.000000e+00 : f32
      %24 = vector.broadcast %cst_21 : f32 to vector<1x128xf32>
      %c0_22 = arith.constant 0 : index
      %c0_23 = arith.constant 0 : index
      %25 = vector.load %arg5[%c0_22, %c0_23] : memref<1x128xf32, #tpu.memory_space<vmem>>, vector<1x128xf32>
      tpu.vector_store %arg5[%c0_22, %c0_23], %24 {strides = array<i32>} : memref<1x128xf32, #tpu.memory_space<vmem>>, vector<1x128xf32>,
      %cst_24 = arith.constant 0.000000e+00 : f32
      %26 = vector.broadcast %cst_24 : f32 to vector<1x128xf32>
      %c0_25 = arith.constant 0 : index
      %c0_26 = arith.constant 0 : index
      %27 = vector.load %arg6[%c0_25, %c0_26] : memref<1x128xf32, #tpu.memory_space<vmem>>, vector<1x128xf32>
      tpu.vector_store %arg6[%c0_25, %c0_26], %26 {strides = array<i32>} : memref<1x128xf32, #tpu.memory_space<vmem>>, vector<1x128xf32>,
    } else {
    }
    %c0 = arith.constant 0 : index
    %c0_1 = arith.constant 0 : index
    %3 = vector.load %arg2[%c0, %c0_1] : memref<8x128xf32, #tpu.memory_space<vmem>>, vector<8x128xf32>
    %c0_2 = arith.constant 0 : index
    %c0_3 = arith.constant 0 : index
    %4 = vector.load %arg3[%c0_2, %c0_3] : memref<8x128xf32, #tpu.memory_space<vmem>>, vector<8x128xf32>
    %5 = arith.subf %3, %4 : vector<8x128xf32>
    %c0_4 = arith.constant 0 : index
    %c0_5 = arith.constant 0 : index
    %6 = vector.load %arg4[%c0_4, %c0_5] : memref<1x128xf32, #tpu.memory_space<vmem>>, vector<1x128xf32>
    %cst = arith.constant dense<0.000000e+00> : vector<128xf32>
    %7 = vector.multi_reduction <add>, %3, %cst [0] : vector<8x128xf32> to vector<128xf32>
    %8 = vector.shape_cast %7 : vector<128xf32> to vector<1x128xf32>
    %9 = arith.addf %6, %8 : vector<1x128xf32>
    %c0_6 = arith.constant 0 : index
    %c0_7 = arith.constant 0 : index
    %10 = vector.load %arg4[%c0_6, %c0_7] : memref<1x128xf32, #tpu.memory_space<vmem>>, vector<1x128xf32>
    tpu.vector_store %arg4[%c0_6, %c0_7], %9 {strides = array<i32>} : memref<1x128xf32, #tpu.memory_space<vmem>>, vector<1x128xf32>,
    %c0_8 = arith.constant 0 : index
    %c0_9 = arith.constant 0 : index
    %11 = vector.load %arg5[%c0_8, %c0_9] : memref<1x128xf32, #tpu.memory_space<vmem>>, vector<1x128xf32>
    %cst_10 = arith.constant dense<0.000000e+00> : vector<128xf32>
    %12 = vector.multi_reduction <add>, %4, %cst_10 [0] : vector<8x128xf32> to vector<128xf32>
    %13 = vector.shape_cast %12 : vector<128xf32> to vector<1x128xf32>
    %14 = arith.addf %11, %13 : vector<1x128xf32>
    %c0_11 = arith.constant 0 : index
    %c0_12 = arith.constant 0 : index
    %15 = vector.load %arg5[%c0_11, %c0_12] : memref<1x128xf32, #tpu.memory_space<vmem>>, vector<1x128xf32>
    tpu.vector_store %arg5[%c0_11, %c0_12], %14 {strides = array<i32>} : memref<1x128xf32, #tpu.memory_space<vmem>>, vector<1x128xf32>,
    %c0_13 = arith.constant 0 : index
    %c0_14 = arith.constant 0 : index
    %16 = vector.load %arg6[%c0_13, %c0_14] : memref<1x128xf32, #tpu.memory_space<vmem>>, vector<1x128xf32>
    %17 = arith.mulf %5, %5 : vector<8x128xf32>
    %cst_15 = arith.constant dense<0.000000e+00> : vector<128xf32>
    %18 = vector.multi_reduction <add>, %17, %cst_15 [0] : vector<8x128xf32> to vector<128xf32>
    %19 = vector.shape_cast %18 : vector<128xf32> to vector<1x128xf32>
    %20 = arith.addf %16, %19 : vector<1x128xf32>
    %c0_16 = arith.constant 0 : index
    %c0_17 = arith.constant 0 : index
    %21 = vector.load %arg6[%c0_16, %c0_17] : memref<1x128xf32, #tpu.memory_space<vmem>>, vector<1x128xf32>
    tpu.vector_store %arg6[%c0_16, %c0_17], %20 {strides = array<i32>} : memref<1x128xf32, #tpu.memory_space<vmem>>, vector<1x128xf32>,
    return
  }
  func.func @transform_0(%arg0: i32, %arg1: i32) -> (i32, i32) {
    %c0_i32 = arith.constant 0 : i32
    return %arg1, %arg0 : i32, i32
  }
  func.func @transform_1(%arg0: i32, %arg1: i32) -> (i32, i32) {
    %c0_i32 = arith.constant 0 : i32
    return %arg1, %arg0 : i32, i32
  }
  func.func @transform_2(%arg0: i32, %arg1: i32) -> (i32, i32) {
    %c0_i32 = arith.constant 0 : i32
    %c0_i32_0 = arith.constant 0 : i32
    return %c0_i32, %arg0 : i32, i32
  }
  func.func @transform_3(%arg0: i32, %arg1: i32) -> (i32, i32) {
    %c0_i32 = arith.constant 0 : i32
    %c0_i32_0 = arith.constant 0 : i32
    return %c0_i32, %arg0 : i32, i32
  }
  func.func @transform_4(%arg0: i32, %arg1: i32) -> (i32, i32) {
    %c0_i32 = arith.constant 0 : i32
    %c0_i32_0 = arith.constant 0 : i32
    return %c0_i32, %arg0 : i32, i32
  }
}

</mosaic_0001>

<llo_original>
// kernel: tpu_custom_call.1
$region0: #{tpu_custom_call.1}
  #allocation0 [shape = 'u32[]', space=smem, size = 0x4, offset = 0x4, fixed_abs, tag = 'smem constant byte address 0x4 - core index']
  #allocation1 [shape = 'u32[144,128]{1,0:T(1,128)}', space=vmem, size = 0x12000, scoped, tag = 'internal scratch']
  %s0 = inlined_call_operand.hbm [shape: f32[24,384], index: 0, kind: input, shape index: {}]
  %s1 = inlined_call_operand.hbm [shape: f32[24,384], index: 1, kind: input, shape index: {}]
  %s2 = inlined_call_operand.hbm [shape: f32[1,384], index: 2, kind: output, shape index: {0}]
  %s3 = inlined_call_operand.hbm [shape: f32[1,384], index: 3, kind: output, shape index: {1}]
  %s4 = inlined_call_operand.hbm [shape: f32[1,384], index: 4, kind: output, shape index: {2}]
  %5 = xla_tuple %s2, %s3, %s4
  %s6 = sld [smem:[#allocation0]]
  $region69: #{tpu_custom_call.1} parent=0
    _
  %s8 = ssub.s32 1, %s6
  %s9 = scalar_select 0, %s8, %s6
  $region1: #{tpu_custom_call.1} parent=0
    #allocation2 [shape = 'u8[8192]{0}', space=vmem, size = 0x2000, scoped, tag = 'input window, operand 0']
    #allocation3 [shape = 's32[2]{0}', space=sflag, size = 0x8, scoped, tag = 'scoped memory for tpu_custom_call.1']
    #allocation4 [shape = 's32[2]{0}', space=sflag, size = 0x8, scoped, tag = 'scoped memory for tpu_custom_call.1']
    #allocation5 [shape = 'u8[8192]{0}', space=vmem, size = 0x2000, scoped, tag = 'input window, operand 1']
    #allocation6 [shape = 's32[2]{0}', space=sflag, size = 0x8, scoped, tag = 'scoped memory for tpu_custom_call.1']
    #allocation7 [shape = 'u8[1024]{0}', space=vmem, size = 0x400, scoped, tag = 'output window, operand 0']
    #allocation8 [shape = 'u8[1024]{0}', space=vmem, size = 0x400, scoped, tag = 'output window, operand 1']
    #allocation9 [shape = 's32[2]{0}', space=sflag, size = 0x8, scoped, tag = 'scoped memory for tpu_custom_call.1']
    #allocation10 [shape = 'u8[1024]{0}', space=vmem, size = 0x400, scoped, tag = 'output window, operand 2']
    %10 = vsyncpa [#allocation3], 0
    %s11 = scalar_lea.sflag [#allocation3], 1
    %12 = vsyncpa %s11, 0
    %13 = vsyncpa [#allocation6], 0
    %s14 = scalar_lea.sflag [#allocation6], 1
    %15 = vsyncpa %s14, 0
    %16 = vsyncpa [#allocation4], 0
    %s17 = scalar_lea.sflag [#allocation4], 1
    %18 = vsyncpa %s17, 0
    %19 = vsyncpa [#allocation9], 0
    %s20 = scalar_lea.sflag [#allocation9], 1
    %21 = vsyncpa %s20, 0
    loop: start=0, step=1, limit=11
    $region2: #{tpu_custom_call.1} parent=1 // loop_pre_header
      _
    $region3: #{tpu_custom_call.1} parent=1 // loop_header
      %s23 = sphi 0, %s27
      %p24 = scmp.ge.s32.totalorder %s23, 11
      %s30 = sphi 0, %s42
      %s31 = sphi 0, %s38
      %s32 = sphi 0, %s30
      %s33 = sphi 0, %s31
      %s34 = sphi 0, %s32
      %s35 = sphi 0, %s33
      %s47 = sphi 0, %s49
      %s50 = sphi 0, %s47
      %s51 = sphi 0, %s50
      %s67 = sphi 0, %s51
      %s75 = sphi 0, %s77
      %s78 = sphi 0, %s75
      %s79 = sphi 0, %s78
      %s95 = sphi 0, %s79
      %s101 = sphi 0, %s103
      %s104 = sphi 0, %s101
      %s105 = sphi 0, %s104
      %s121 = sphi 0, %s105
      %s127 = sphi 0, %s129
      %s130 = sphi 0, %s127
      %s131 = sphi 0, %s130
      %s147 = sphi 0, %s131
      %s153 = sphi 0, %s155
      %s156 = sphi 0, %s153
      %s157 = sphi 0, %s156
      %s173 = sphi 0, %s157
    $region4: #{tpu_custom_call.1} parent=1 // loop_header_branch
      %26 = sbr.rel (%p24) target = $region8
    $region5: #{tpu_custom_call.1} parent=1 // loop_body
      %s28 = ssub.s32 %s23, 1
      %s29 = ssub.s32 %s23, 2
      %s36 = sadd.s32 1, %s31
      %p37 = scmp.ge.s32.totalorder %s36, 3
      %s38 = scalar_select %p37, 0, %s36
      %s39 = sadd.s32 1, %s30
      %s40 = scalar_select %p37, %s39, %s30
      %p41 = scmp.ge.s32.totalorder %s40, 3
      %s42 = scalar_select %p41, 0, %s40
      %s43 = ssub.s32 %s31, %s38
      %s44 = ssub.s32 %s30, %s42
      %s45 = sor.u32 %s43, %s44
      %p46 = scmp.eq.s32.totalorder %s45, 0
      %s48 = sadd.s32 %s47, 1
      %s49 = scalar_select %p46, %s47, %s48
      %p52 = pneg %p46
      %p53 = scmp.eq.s32.totalorder %s23, 8
      %p54 = por %p52, %p53
      %p55 = scmp.ne.s32.totalorder %s47, %s50
      %p56 = scmp.eq.s32.totalorder %s23, 0
      %p57 = por %p55, %p56
      %p58 = scmp.ne.s32.totalorder %s47, %s50
      %p59 = scmp.eq.s32.totalorder %s28, 8
      %p60 = por %p58, %p59
      %p61 = scmp.ne.s32.totalorder %s50, %s51
      %p62 = scmp.eq.s32.totalorder %s28, 0
      %p63 = por %p61, %p62
      %p64 = scmp.ne.s32.totalorder %s50, %s51
      %p65 = scmp.eq.s32.totalorder %s29, 8
      %p66 = por %p64, %p65
      %p68 = scmp.ne.s32.totalorder %s51, %s67
      %p69 = scmp.eq.s32.totalorder %s29, 0
      %p70 = por %p68, %p69
      %s71 = ssub.s32 %s31, %s38
      %s72 = ssub.s32 %s30, %s42
      %s73 = sor.u32 %s71, %s72
      %p74 = scmp.eq.s32.totalorder %s73, 0
      %s76 = sadd.s32 %s75, 1
      %s77 = scalar_select %p74, %s75, %s76
      %p80 = pneg %p74
      %p81 = scmp.eq.s32.totalorder %s23, 8
      %p82 = por %p80, %p81
      %p83 = scmp.ne.s32.totalorder %s75, %s78
      %p84 = scmp.eq.s32.totalorder %s23, 0
      %p85 = por %p83, %p84
      %p86 = scmp.ne.s32.totalorder %s75, %s78
      %p87 = scmp.eq.s32.totalorder %s28, 8
      %p88 = por %p86, %p87
      %p89 = scmp.ne.s32.totalorder %s78, %s79
      %p90 = scmp.eq.s32.totalorder %s28, 0
      %p91 = por %p89, %p90
      %p92 = scmp.ne.s32.totalorder %s78, %s79
      %p93 = scmp.eq.s32.totalorder %s29, 8
      %p94 = por %p92, %p93
      %p96 = scmp.ne.s32.totalorder %s79, %s95
      %p97 = scmp.eq.s32.totalorder %s29, 0
      %p98 = por %p96, %p97
      %s99 = ssub.s32 %s30, %s42
      %p100 = scmp.eq.s32.totalorder %s99, 0
      %s102 = sadd.s32 %s101, 1
      %s103 = scalar_select %p100, %s101, %s102
      %p106 = pneg %p100
      %p107 = scmp.eq.s32.totalorder %s23, 8
      %p108 = por %p106, %p107
      %p109 = scmp.ne.s32.totalorder %s101, %s104
      %p110 = scmp.eq.s32.totalorder %s23, 0
      %p111 = por %p109, %p110
      %p112 = scmp.ne.s32.totalorder %s101, %s104
      %p113 = scmp.eq.s32.totalorder %s28, 8
      %p114 = por %p112, %p113
      %p115 = scmp.ne.s32.totalorder %s104, %s105
      %p116 = scmp.eq.s32.totalorder %s28, 0
      %p117 = por %p115, %p116
      %p118 = scmp.ne.s32.totalorder %s104, %s105
      %p119 = scmp.eq.s32.totalorder %s29, 8
      %p120 = por %p118, %p119
      %p122 = scmp.ne.s32.totalorder %s105, %s121
      %p123 = scmp.eq.s32.totalorder %s29, 0
      %p124 = por %p122, %p123
      %s125 = ssub.s32 %s30, %s42
      %p126 = scmp.eq.s32.totalorder %s125, 0
      %s128 = sadd.s32 %s127, 1
      %s129 = scalar_select %p126, %s127, %s128
      %p132 = pneg %p126
      %p133 = scmp.eq.s32.totalorder %s23, 8
      %p134 = por %p132, %p133
      %p135 = scmp.ne.s32.totalorder %s127, %s130
      %p136 = scmp.eq.s32.totalorder %s23, 0
      %p137 = por %p135, %p136
      %p138 = scmp.ne.s32.totalorder %s127, %s130
      %p139 = scmp.eq.s32.totalorder %s28, 8
      %p140 = por %p138, %p139
      %p141 = scmp.ne.s32.totalorder %s130, %s131
      %p142 = scmp.eq.s32.totalorder %s28, 0
      %p143 = por %p141, %p142
      %p144 = scmp.ne.s32.totalorder %s130, %s131
      %p145 = scmp.eq.s32.totalorder %s29, 8
      %p146 = por %p144, %p145
      %p148 = scmp.ne.s32.totalorder %s131, %s147
      %p149 = scmp.eq.s32.totalorder %s29, 0
      %p150 = por %p148, %p149
      %s151 = ssub.s32 %s30, %s42
      %p152 = scmp.eq.s32.totalorder %s151, 0
      %s154 = sadd.s32 %s153, 1
      %s155 = scalar_select %p152, %s153, %s154
      %p158 = pneg %p152
      %p159 = scmp.eq.s32.totalorder %s23, 8
      %p160 = por %p158, %p159
      %p161 = scmp.ne.s32.totalorder %s153, %s156
      %p162 = scmp.eq.s32.totalorder %s23, 0
      %p163 = por %p161, %p162
      %p164 = scmp.ne.s32.totalorder %s153, %s156
      %p165 = scmp.eq.s32.totalorder %s28, 8
      %p166 = por %p164, %p165
      %p167 = scmp.ne.s32.totalorder %s156, %s157
      %p168 = scmp.eq.s32.totalorder %s28, 0
      %p169 = por %p167, %p168
      %p170 = scmp.ne.s32.totalorder %s156, %s157
      %p171 = scmp.eq.s32.totalorder %s29, 8
      %p172 = por %p170, %p171
      %p174 = scmp.ne.s32.totalorder %s157, %s173
      %p175 = scmp.eq.s32.totalorder %s29, 0
      %p176 = por %p174, %p175
      %p177 = scmp.le.s32.totalorder 1, %s23
      %p178 = scmp.lt.s32.totalorder %s23, 10
      %p179 = pnand %p177, %p178
      %p180 = pneg %p179
      // Predicated region
      $region9: #{tpu_custom_call.1} parent=5 // pred_check
        _
      $region10: #{tpu_custom_call.1} parent=5 // pred_check_branch
        %182 = sbr.rel (%p179) target = $region12
      $region11: #{tpu_custom_call.1} parent=5 // pred_region
        %s183 = ssub.s32 %s23, 1
      $region12: #{tpu_custom_call.1} parent=5 // pred_fallthru
        _
      %p184 = scmp.lt.s32.totalorder %s23, 9
      // Predicated region
      $region13: #{tpu_custom_call.1} parent=5 // pred_check
        %p185 = pneg %p184
      $region14: #{tpu_custom_call.1} parent=5 // pred_check_branch
        %187 = sbr.rel (%p185) target = $region16
      $region15: #{tpu_custom_call.1} parent=5 // pred_region
        // Predicated region
        $region17: #{tpu_custom_call.1} parent=15 // pred_check
          %p188 = pneg %p57
        $region18: #{tpu_custom_call.1} parent=15 // pred_check_branch
          %190 = sbr.rel (%p188) target = $region20
        $region19: #{tpu_custom_call.1} parent=15 // pred_region
          %s191 = sand.u32 %s47, 1
          %s192 = scalar_lea.sflag [#allocation3], %s191
          %s193 = sand.u32 %s47, 1
          %s194 = smul.addr %s193, 8
          %s195 = scalar_lea.vmem [#allocation2], %s194
          %s197 = ssub.s32 128, 128
          %198 = vsyncadd %s192, %s197
          %s199 = smul.addr %s31, 3
          %s200 = sadd.s32 %s30, %s199
          %s201 = smul.addr %s200, 128
          %s202 = scalar_lea.hbm %s0, %s201
          %s204 = sshll.u32 %s195, 4
          %s205 = int_to_ptr.vmem [resolvable:$true] %s204
          %207 = dma.hbm_to_vmem [thread:$0]  %s202, 128, %s205, %s192
        $region20: #{tpu_custom_call.1} parent=15 // pred_fallthru
          _
        // Predicated region
        $region21: #{tpu_custom_call.1} parent=15 // pred_check
          %p208 = pneg %p85
        $region22: #{tpu_custom_call.1} parent=15 // pred_check_branch
          %210 = sbr.rel (%p208) target = $region24
        $region23: #{tpu_custom_call.1} parent=15 // pred_region
          %s211 = sand.u32 %s75, 1
          %s212 = scalar_lea.sflag [#allocation6], %s211
          %s213 = sand.u32 %s75, 1
          %s214 = smul.addr %s213, 8
          %s215 = scalar_lea.vmem [#allocation5], %s214
          %s217 = ssub.s32 128, 128
          %218 = vsyncadd %s212, %s217
          %s219 = smul.addr %s31, 3
          %s220 = sadd.s32 %s30, %s219
          %s221 = smul.addr %s220, 128
          %s222 = scalar_lea.hbm %s1, %s221
          %s224 = sshll.u32 %s215, 4
          %s225 = int_to_ptr.vmem [resolvable:$true] %s224
          %227 = dma.hbm_to_vmem [thread:$0]  %s222, 128, %s225, %s212
        $region24: #{tpu_custom_call.1} parent=15 // pred_fallthru
          _
      $region16: #{tpu_custom_call.1} parent=5 // pred_fallthru
        _
      %p228 = scmp.le.s32.totalorder 1, %s23
      %p229 = scmp.lt.s32.totalorder %s23, 10
      %p230 = pnand %p228, %p229
      %p231 = pneg %p230
      // Predicated region
      $region25: #{tpu_custom_call.1} parent=5 // pred_check
        _
      $region26: #{tpu_custom_call.1} parent=5 // pred_check_branch
        %233 = sbr.rel (%p230) target = $region28
      $region27: #{tpu_custom_call.1} parent=5 // pred_region
        %s234 = ssub.s32 %s23, 1
        %s235 = sand.u32 %s50, 1
        %s236 = scalar_lea.sflag [#allocation3], %s235
        %s237 = sand.u32 %s50, 1
        %s238 = smul.addr %s237, 8
        %s239 = scalar_lea.vmem [#allocation2], %s238
        // Predicated region
        $region29: #{tpu_custom_call.1} parent=27 // pred_check
          %p240 = pneg %p63
        $region30: #{tpu_custom_call.1} parent=27 // pred_check_branch
          %242 = sbr.rel (%p240) target = $region32
        $region31: #{tpu_custom_call.1} parent=27 // pred_region
          %243 = dma.done %s236, 128
        $region32: #{tpu_custom_call.1} parent=27 // pred_fallthru
          _
        %s244 = sand.u32 %s78, 1
        %s245 = scalar_lea.sflag [#allocation6], %s244
        %s246 = sand.u32 %s78, 1
        %s247 = smul.addr %s246, 8
        %s248 = scalar_lea.vmem [#allocation5], %s247
        // Predicated region
        $region33: #{tpu_custom_call.1} parent=27 // pred_check
          %p249 = pneg %p91
        $region34: #{tpu_custom_call.1} parent=27 // pred_check_branch
          %251 = sbr.rel (%p249) target = $region36
        $region35: #{tpu_custom_call.1} parent=27 // pred_region
          %252 = dma.done %s245, 128
        $region36: #{tpu_custom_call.1} parent=27 // pred_fallthru
          _
        %s253 = sand.u32 %s50, 1
        %s254 = scalar_lea.sflag [#allocation3], %s253
        %s255 = sand.u32 %s50, 1
        %s256 = smul.addr %s255, 8
        %s257 = scalar_lea.vmem [#allocation2], %s256
        %p258 = pneg %p63
        %p259 = pneg %p60
        %s260 = sand.u32 %s78, 1
        %s261 = scalar_lea.sflag [#allocation6], %s260
        %s262 = sand.u32 %s78, 1
        %s263 = smul.addr %s262, 8
        %s264 = scalar_lea.vmem [#allocation5], %s263
        %p265 = pneg %p91
        %p266 = pneg %p88
        %p267 = pneg %p117
        %p268 = pneg %p114
        %s269 = sand.u32 %s104, 1
        %s270 = scalar_lea.sflag [#allocation4], %s269
        %s271 = sand.u32 %s104, 1
        %s272 = scalar_lea.vmem [#allocation7], %s271
        %p273 = pneg %p143
        %p274 = pneg %p140
        %s275 = sand.u32 %s28, 1
        %s276 = scalar_lea.sflag [#allocation9], %s275
        %s277 = sand.u32 %s130, 1
        %s278 = scalar_lea.vmem [#allocation8], %s277
        %p279 = pneg %p169
        %p280 = pneg %p166
        %s281 = sand.u32 %s28, 1
        %s282 = scalar_lea.sflag [#allocation9], %s281
        %s283 = sand.u32 %s156, 1
        %s284 = scalar_lea.vmem [#allocation10], %s283
        %p285 = scmp.eq.s32.totalorder %s33, 0
        // Predicated region
        $region37: #{tpu_custom_call.1} parent=27 // pred_check
          %p286 = pneg %p285
        $region38: #{tpu_custom_call.1} parent=27 // pred_check_branch
          %288 = sbr.rel (%p286) target = $region40
        $region39: #{tpu_custom_call.1} parent=27 // pred_region
          %289 = vst [vmem:[%s272] sm:$0x1] 0.0
          %290 = vst [vmem:[%s278] sm:$0x1] 0.0
          %291 = vst [vmem:[%s284] sm:$0x1] 0.0
        $region40: #{tpu_custom_call.1} parent=27 // pred_fallthru
          _
        %v292 = vld [vmem:[%s239] sm:$0xff]
        %v293 = vld [vmem:[%s248] sm:$0xff]
        %v294 = vsub.f32 %v292, %v293
        %v295 = vld [vmem:[%s272] sm:$0x1]
        %v296 = vrot.slane %v292, 4
        %v297 = vadd.f32 %v292, %v296
        %v298 = vrot.slane %v297, 2
        %v299 = vadd.f32 %v297, %v298
        %v300 = vrot.slane %v299, 1
        %v301 = vadd.f32 %v299, %v300
        %v302 = vadd.f32 %v295, %v301
        %303 = vst [vmem:[%s272] sm:$0x1] %v302
        %v304 = vld [vmem:[%s278] sm:$0x1]
        %v305 = vrot.slane %v293, 4
        %v306 = vadd.f32 %v293, %v305
        %v307 = vrot.slane %v306, 2
        %v308 = vadd.f32 %v306, %v307
        %v309 = vrot.slane %v308, 1
        %v310 = vadd.f32 %v308, %v309
        %v311 = vadd.f32 %v304, %v310
        %312 = vst [vmem:[%s278] sm:$0x1] %v311
        %v313 = vld [vmem:[%s284] sm:$0x1]
        %v314 = vmul.f32 %v294, %v294
        %v315 = vrot.slane %v314, 4
        %v316 = vadd.f32 %v314, %v315
        %v317 = vrot.slane %v316, 2
        %v318 = vadd.f32 %v316, %v317
        %v319 = vrot.slane %v318, 1
        %v320 = vadd.f32 %v318, %v319
        %v321 = vadd.f32 %v313, %v320
        %322 = vst [vmem:[%s284] sm:$0x1] %v321
        %s323 = sand.u32 %s104, 1
        %s324 = scalar_lea.sflag [#allocation4], %s323
        %s325 = sand.u32 %s104, 1
        %s326 = scalar_lea.vmem [#allocation7], %s325
        %s327 = sand.u32 %s28, 1
        %s328 = scalar_lea.sflag [#allocation9], %s327
        %s329 = sand.u32 %s130, 1
        %s330 = scalar_lea.vmem [#allocation8], %s329
        %s331 = sand.u32 %s28, 1
        %s332 = scalar_lea.sflag [#allocation9], %s331
        %s333 = sand.u32 %s156, 1
        %s334 = scalar_lea.vmem [#allocation10], %s333
        // Predicated region
        $region41: #{tpu_custom_call.1} parent=27 // pred_check
          %p335 = pneg %p114
        $region42: #{tpu_custom_call.1} parent=27 // pred_check_branch
          %337 = sbr.rel (%p335) target = $region44
        $region43: #{tpu_custom_call.1} parent=27 // pred_region
          %s339 = ssub.s32 16, 16
          %340 = vsyncadd %s324, %s339
          %s341 = smul.addr %s32, 16
          %s342 = scalar_lea.hbm %s2, %s341
          %s344 = sshll.u32 %s326, 4
          %s345 = int_to_ptr.vmem [resolvable:$true] %s344
          %347 = dma.vmem_to_hbm [thread:$0]  %s345, 16, %s342, %s324
        $region44: #{tpu_custom_call.1} parent=27 // pred_fallthru
          _
        // Predicated region
        $region45: #{tpu_custom_call.1} parent=27 // pred_check
          %p348 = pneg %p140
        $region46: #{tpu_custom_call.1} parent=27 // pred_check_branch
          %350 = sbr.rel (%p348) target = $region48
        $region47: #{tpu_custom_call.1} parent=27 // pred_region
          %s352 = ssub.s32 16, 16
          %353 = vsyncadd %s328, %s352
          %s354 = smul.addr %s32, 16
          %s355 = scalar_lea.hbm %s3, %s354
          %s357 = sshll.u32 %s330, 4
          %s358 = int_to_ptr.vmem [resolvable:$true] %s357
          %360 = dma.vmem_to_hbm [thread:$0]  %s358, 16, %s355, %s328
        $region48: #{tpu_custom_call.1} parent=27 // pred_fallthru
          _
        // Predicated region
        $region49: #{tpu_custom_call.1} parent=27 // pred_check
          %p361 = pneg %p166
        $region50: #{tpu_custom_call.1} parent=27 // pred_check_branch
          %363 = sbr.rel (%p361) target = $region52
        $region51: #{tpu_custom_call.1} parent=27 // pred_region
          %s365 = ssub.s32 16, 16
          %366 = vsyncadd %s332, %s365
          %s367 = smul.addr %s32, 16
          %s368 = scalar_lea.hbm %s4, %s367
          %s370 = sshll.u32 %s334, 4
          %s371 = int_to_ptr.vmem [resolvable:$true] %s370
          %373 = dma.vmem_to_hbm [thread:$0]  %s371, 16, %s368, %s332
        $region52: #{tpu_custom_call.1} parent=27 // pred_fallthru
          _
      $region28: #{tpu_custom_call.1} parent=5 // pred_fallthru
        _
      %p374 = scmp.le.s32.totalorder 2, %s23
      // Predicated region
      $region53: #{tpu_custom_call.1} parent=5 // pred_check
        %p375 = pneg %p374
      $region54: #{tpu_custom_call.1} parent=5 // pred_check_branch
        %377 = sbr.rel (%p375) target = $region56
      $region55: #{tpu_custom_call.1} parent=5 // pred_region
        %s378 = ssub.s32 %s23, 2
        // Predicated region
        $region57: #{tpu_custom_call.1} parent=55 // pred_check
          %p379 = pneg %p120
        $region58: #{tpu_custom_call.1} parent=55 // pred_check_branch
          %381 = sbr.rel (%p379) target = $region60
        $region59: #{tpu_custom_call.1} parent=55 // pred_region
          %s382 = sand.u32 %s105, 1
          %s383 = scalar_lea.sflag [#allocation4], %s382
          %s384 = sand.u32 %s105, 1
          %s385 = scalar_lea.vmem [#allocation7], %s384
          %386 = dma.done %s383, 16
        $region60: #{tpu_custom_call.1} parent=55 // pred_fallthru
          _
        // Predicated region
        $region61: #{tpu_custom_call.1} parent=55 // pred_check
          %p387 = pneg %p146
        $region62: #{tpu_custom_call.1} parent=55 // pred_check_branch
          %389 = sbr.rel (%p387) target = $region64
        $region63: #{tpu_custom_call.1} parent=55 // pred_region
          %s390 = sand.u32 %s29, 1
          %s391 = scalar_lea.sflag [#allocation9], %s390
          %s392 = sand.u32 %s131, 1
          %s393 = scalar_lea.vmem [#allocation8], %s392
          %394 = dma.done %s391, 16
        $region64: #{tpu_custom_call.1} parent=55 // pred_fallthru
          _
        // Predicated region
        $region65: #{tpu_custom_call.1} parent=55 // pred_check
          %p395 = pneg %p172
        $region66: #{tpu_custom_call.1} parent=55 // pred_check_branch
          %397 = sbr.rel (%p395) target = $region68
        $region67: #{tpu_custom_call.1} parent=55 // pred_region
          %s398 = sand.u32 %s29, 1
          %s399 = scalar_lea.sflag [#allocation9], %s398
          %s400 = sand.u32 %s157, 1
          %s401 = scalar_lea.vmem [#allocation10], %s400
          %402 = dma.done %s399, 16
        $region68: #{tpu_custom_call.1} parent=55 // pred_fallthru
          _
      $region56: #{tpu_custom_call.1} parent=5 // pred_fallthru
        _
    $region6: #{tpu_custom_call.1} parent=1 // loop_footer
      %s27 = sadd.s32 1, %s23
    $region7: #{tpu_custom_call.1} parent=1 // loop_footer_branch
      %22 = sbr.rel target = $region3
    $region8: #{tpu_custom_call.1} parent=1 // loop_exit
      _
    %403 = vsyncpa [#allocation3], 1
    %s404 = scalar_lea.sflag [#allocation3], 1
    %405 = vsyncpa %s404, 1
    %406 = vsyncpa [#allocation6], 1
    %s407 = scalar_lea.sflag [#allocation6], 1
    %408 = vsyncpa %s407, 1
    %409 = vsyncpa [#allocation4], 1
    %s410 = scalar_lea.sflag [#allocation4], 1
    %411 = vsyncpa %s410, 1
    %412 = vsyncpa [#allocation9], 1
    %s413 = scalar_lea.sflag [#allocation9], 1
    %414 = vsyncpa %s413, 1

</llo_original>
